<compile_context>
chip_gen: v6e
topology: v6e:2x2x1
jax: 0.10.0
libtpu: 0.0.40
codegen_flags: <defaults>
</compile_context>

<pallas_src>
import jax
import jax.numpy as jnp
from jax import lax
from jax.experimental import pallas as pl
from jax.experimental.pallas import tpu as pltpu


def _spatial_attention_kernel(x_ref, w_ref, o_ref):
    # x_ref: (1, C, H, W) VMEM block for the current batch item
    # w_ref: (18,) f32 conv weights in SMEM, row-major [c, ki, kj]
    #        (c in {avg, max}, ki/kj in {0, 1, 2})
    # o_ref: (1, 1, H, W)
    _, C, H, W = x_ref.shape

    # ---- fused channel mean + max: one streaming pass over C --------------
    first = x_ref[0, 0].astype(jnp.float32)            # (H, W)

    def body(c, carry):
        s, m = carry
        plane = x_ref[0, c].astype(jnp.float32)
        return s + plane, jnp.maximum(m, plane)

    sum_p, max_p = lax.fori_loop(1, C, body, (first, first), unroll=True)
    avg_p = sum_p * (1.0 / C)

    # ---- 3x3 cross-correlation (padding=1) via XLU rolls + boundary masks -
    # Hoisted boundary masks: positions that wrapped around during the
    # circular roll are zeroed (equivalent to zero padding).
    row = lax.broadcasted_iota(jnp.int32, (H, W), 0)
    col = lax.broadcasted_iota(jnp.int32, (H, W), 1)
    row_keep = {-1: row >= 1, 1: row < H - 1}
    col_keep = {-1: col >= 1, 1: col < W - 1}

    def shift(f, s, axis, keep):
        # g[..., i, ...] = f[..., i + s, ...] along `axis`, zero out of range.
        if s == 0:
            return f
        n = f.shape[axis]
        g = pltpu.roll(f, (-s) % n, axis)
        return jnp.where(keep[s], g, 0.0)

    acc = jnp.zeros((H, W), jnp.float32)
    for c, plane in enumerate((avg_p, max_p)):
        # Precompute the three lane-direction (W) shifts once per channel.
        cols = [shift(plane, sj, 1, col_keep) for sj in (-1, 0, 1)]
        for ki, si in enumerate((-1, 0, 1)):
            for kj in range(3):
                tap = shift(cols[kj], si, 0, row_keep)
                acc = acc + w_ref[c * 9 + ki * 3 + kj] * tap

    o_ref[0, 0] = jax.nn.sigmoid(acc).astype(o_ref.dtype)


def spatial_attention(x, weight):
    """x: (N, C, H, W); weight: (1, 2, 3, 3) Conv2d(2,1,3,padding=1,bias=False)."""
    N, C, H, W = x.shape
    w_flat = weight.astype(jnp.float32).reshape(18)

    return pl.pallas_call(
        _spatial_attention_kernel,
        out_shape=jax.ShapeDtypeStruct((N, 1, H, W), x.dtype),
        grid_spec=pltpu.PrefetchScalarGridSpec(
            num_scalar_prefetch=0,
            grid=(N,),
            in_specs=[
                pl.BlockSpec((1, C, H, W), lambda n: (n, 0, 0, 0)),
                pl.BlockSpec(memory_space=pltpu.MemorySpace.SMEM),
            ],
            out_specs=pl.BlockSpec((1, 1, H, W), lambda n: (n, 0, 0, 0)),
        ),
        compiler_params=pltpu.CompilerParams(
            dimension_semantics=("parallel",),
        ),
    )(x, w_flat)


def spatial_attention_ref(x, weight):
    """Pure-JAX reference mirroring the PyTorch forward."""
    avg_out = jnp.mean(x, axis=1, keepdims=True)
    max_out = jnp.max(x, axis=1, keepdims=True)
    feat = jnp.concatenate([avg_out, max_out], axis=1)  # (N, 2, H, W)
    y = lax.conv_general_dilated(
        feat, weight,
        window_strides=(1, 1),
        padding=((1, 1), (1, 1)),
        dimension_numbers=("NCHW", "OIHW", "NCHW"),
        precision=lax.Precision.HIGHEST,
    )
    return jax.nn.sigmoid(y)


if __name__ == "__main__":
    key = jax.random.PRNGKey(0)
    kx, kw = jax.random.split(key)

    # small deterministic example
    x = jax.random.normal(kx, (2, 4, 16, 16), dtype=jnp.float32)
    # Conv2d(2, 1, 3, padding=1, bias=False) weight
    weight = jax.random.normal(kw, (1, 2, 3, 3), dtype=jnp.float32) * 0.1

    out = spatial_attention(x, weight)
    out = jax.block_until_ready(out)

    ref = spatial_attention_ref(x, weight)
    assert out.shape == (2, 1, 16, 16)
    assert jnp.allclose(out, ref, atol=1e-5, rtol=1e-5), "mismatch vs reference"

    print("KERNEL_OK")
</pallas_src>

<mosaic_0001>
module attributes {stable_mosaic.version = 11 : i64} {
  func.func @_spatial_attention_kernel(%arg0: i32, %arg1: memref<1x4x16x16xf32, #tpu.memory_space<vmem>>, %arg2: memref<18xf32, #tpu.memory_space<smem>>, %arg3: memref<1x1x16x16xf32, #tpu.memory_space<vmem>>) attributes {dimension_semantics = [#tpu.dimension_semantics<parallel>], iteration_bounds = array<i64: 2>, scalar_prefetch = 0 : i64, scratch_operands = 0 : i64, tpu.core_type = #tpu.core_type<tc>, window_params = [{transform_indices = @transform_0, window_bounds = array<i64: 1, 4, 16, 16>}, {transform_indices = @transform_1, window_bounds = array<i64: 18>}, {transform_indices = @transform_2, window_bounds = array<i64: 1, 1, 16, 16>}]} {
    %c0 = arith.constant 0 : index
    %c0_0 = arith.constant 0 : index
    %c0_1 = arith.constant 0 : index
    %c0_2 = arith.constant 0 : index
    %0 = vector.load %arg1[%c0, %c0_0, %c0_1, %c0_2] : memref<1x4x16x16xf32, #tpu.memory_space<vmem>>, vector<1x1x16x16xf32>
    %1 = vector.shape_cast %0 : vector<1x1x16x16xf32> to vector<16x16xf32>
    %c1_i32 = arith.constant 1 : i32
    %c0_3 = arith.constant 0 : index
    %2 = arith.index_cast %c1_i32 : i32 to index
    %c0_4 = arith.constant 0 : index
    %c0_5 = arith.constant 0 : index
    %3 = vector.load %arg1[%c0_3, %2, %c0_4, %c0_5] : memref<1x4x16x16xf32, #tpu.memory_space<vmem>>, vector<1x1x16x16xf32>
    %4 = vector.shape_cast %3 : vector<1x1x16x16xf32> to vector<16x16xf32>
    %5 = arith.addf %1, %4 : vector<16x16xf32>
    %6 = arith.maximumf %1, %4 : vector<16x16xf32>
    %c2_i32 = arith.constant 2 : i32
    %c0_6 = arith.constant 0 : index
    %7 = arith.index_cast %c2_i32 : i32 to index
    %c0_7 = arith.constant 0 : index
    %c0_8 = arith.constant 0 : index
    %8 = vector.load %arg1[%c0_6, %7, %c0_7, %c0_8] : memref<1x4x16x16xf32, #tpu.memory_space<vmem>>, vector<1x1x16x16xf32>
    %9 = vector.shape_cast %8 : vector<1x1x16x16xf32> to vector<16x16xf32>
    %10 = arith.addf %5, %9 : vector<16x16xf32>
    %11 = arith.maximumf %6, %9 : vector<16x16xf32>
    %c3_i32 = arith.constant 3 : i32
    %c0_9 = arith.constant 0 : index
    %12 = arith.index_cast %c3_i32 : i32 to index
    %c0_10 = arith.constant 0 : index
    %c0_11 = arith.constant 0 : index
    %13 = vector.load %arg1[%c0_9, %12, %c0_10, %c0_11] : memref<1x4x16x16xf32, #tpu.memory_space<vmem>>, vector<1x1x16x16xf32>
    %14 = vector.shape_cast %13 : vector<1x1x16x16xf32> to vector<16x16xf32>
    %15 = arith.addf %10, %14 : vector<16x16xf32>
    %16 = arith.maximumf %11, %14 : vector<16x16xf32>
    %c3_i32_12 = arith.constant 3 : i32
    %cst = arith.constant 2.500000e-01 : f32
    %17 = vector.broadcast %cst : f32 to vector<16x16xf32>
    %18 = arith.mulf %15, %17 : vector<16x16xf32>
    %19 = tpu.iota {dimensions = array<i32: 0>} : vector<16x16xi32>
    %20 = tpu.iota {dimensions = array<i32: 1>} : vector<16x16xi32>
    %c1_i32_13 = arith.constant 1 : i32
    %21 = vector.broadcast %c1_i32_13 : i32 to vector<16x16xi32>
    %22 = arith.cmpi sge, %19, %21 : vector<16x16xi32>
    %c15_i32 = arith.constant 15 : i32
    %23 = vector.broadcast %c15_i32 : i32 to vector<16x16xi32>
    %24 = arith.cmpi slt, %19, %23 : vector<16x16xi32>
    %c1_i32_14 = arith.constant 1 : i32
    %25 = vector.broadcast %c1_i32_14 : i32 to vector<16x16xi32>
    %26 = arith.cmpi sge, %20, %25 : vector<16x16xi32>
    %c15_i32_15 = arith.constant 15 : i32
    %27 = vector.broadcast %c15_i32_15 : i32 to vector<16x16xi32>
    %28 = arith.cmpi slt, %20, %27 : vector<16x16xi32>
    %cst_16 = arith.constant 0.000000e+00 : f32
    %29 = vector.broadcast %cst_16 : f32 to vector<16x16xf32>
    %c1_i32_17 = arith.constant 1 : i32
    %30 = tpu.dynamic_rotate %18 by %c1_i32_17 dim 1 : vector<16x16xf32>, i32 -> vector<16x16xf32>
    %cst_18 = arith.constant 0.000000e+00 : f32
    %31 = vector.broadcast %cst_18 : f32 to vector<16x16xf32>
    %32 = arith.select %26, %30, %31 : vector<16x16xi1>, vector<16x16xf32>
    %c15_i32_19 = arith.constant 15 : i32
    %33 = tpu.dynamic_rotate %18 by %c15_i32_19 dim 1 : vector<16x16xf32>, i32 -> vector<16x16xf32>
    %cst_20 = arith.constant 0.000000e+00 : f32
    %34 = vector.broadcast %cst_20 : f32 to vector<16x16xf32>
    %35 = arith.select %28, %33, %34 : vector<16x16xi1>, vector<16x16xf32>
    %c1_i32_21 = arith.constant 1 : i32
    %36 = tpu.dynamic_rotate %32 by %c1_i32_21 dim 0 : vector<16x16xf32>, i32 -> vector<16x16xf32>
    %cst_22 = arith.constant 0.000000e+00 : f32
    %37 = vector.broadcast %cst_22 : f32 to vector<16x16xf32>
    %38 = arith.select %22, %36, %37 : vector<16x16xi1>, vector<16x16xf32>
    %c0_23 = arith.constant 0 : index
    %39 = memref.load %arg2[%c0_23] : memref<18xf32, #tpu.memory_space<smem>>
    %40 = vector.broadcast %39 : f32 to vector<16x16xf32>
    %41 = arith.mulf %40, %38 : vector<16x16xf32>
    %42 = arith.addf %29, %41 : vector<16x16xf32>
    %c1_i32_24 = arith.constant 1 : i32
    %43 = tpu.dynamic_rotate %18 by %c1_i32_24 dim 0 : vector<16x16xf32>, i32 -> vector<16x16xf32>
    %cst_25 = arith.constant 0.000000e+00 : f32
    %44 = vector.broadcast %cst_25 : f32 to vector<16x16xf32>
    %45 = arith.select %22, %43, %44 : vector<16x16xi1>, vector<16x16xf32>
    %c1 = arith.constant 1 : index
    %46 = memref.load %arg2[%c1] : memref<18xf32, #tpu.memory_space<smem>>
    %47 = vector.broadcast %46 : f32 to vector<16x16xf32>
    %48 = arith.mulf %47, %45 : vector<16x16xf32>
    %49 = arith.addf %42, %48 : vector<16x16xf32>
    %c1_i32_26 = arith.constant 1 : i32
    %50 = tpu.dynamic_rotate %35 by %c1_i32_26 dim 0 : vector<16x16xf32>, i32 -> vector<16x16xf32>
    %cst_27 = arith.constant 0.000000e+00 : f32
    %51 = vector.broadcast %cst_27 : f32 to vector<16x16xf32>
    %52 = arith.select %22, %50, %51 : vector<16x16xi1>, vector<16x16xf32>
    %c2 = arith.constant 2 : index
    %53 = memref.load %arg2[%c2] : memref<18xf32, #tpu.memory_space<smem>>
    %54 = vector.broadcast %53 : f32 to vector<16x16xf32>
    %55 = arith.mulf %54, %52 : vector<16x16xf32>
    %56 = arith.addf %49, %55 : vector<16x16xf32>
    %c3 = arith.constant 3 : index
    %57 = memref.load %arg2[%c3] : memref<18xf32, #tpu.memory_space<smem>>
    %58 = vector.broadcast %57 : f32 to vector<16x16xf32>
    %59 = arith.mulf %58, %32 : vector<16x16xf32>
    %60 = arith.addf %56, %59 : vector<16x16xf32>
    %c4 = arith.constant 4 : index
    %61 = memref.load %arg2[%c4] : memref<18xf32, #tpu.memory_space<smem>>
    %62 = vector.broadcast %61 : f32 to vector<16x16xf32>
    %63 = arith.mulf %62, %18 : vector<16x16xf32>
    %64 = arith.addf %60, %63 : vector<16x16xf32>
    %c5 = arith.constant 5 : index
    %65 = memref.load %arg2[%c5] : memref<18xf32, #tpu.memory_space<smem>>
    %66 = vector.broadcast %65 : f32 to vector<16x16xf32>
    %67 = arith.mulf %66, %35 : vector<16x16xf32>
    %68 = arith.addf %64, %67 : vector<16x16xf32>
    %c15_i32_28 = arith.constant 15 : i32
    %69 = tpu.dynamic_rotate %32 by %c15_i32_28 dim 0 : vector<16x16xf32>, i32 -> vector<16x16xf32>
    %cst_29 = arith.constant 0.000000e+00 : f32
    %70 = vector.broadcast %cst_29 : f32 to vector<16x16xf32>
    %71 = arith.select %24, %69, %70 : vector<16x16xi1>, vector<16x16xf32>
    %c6 = arith.constant 6 : index
    %72 = memref.load %arg2[%c6] : memref<18xf32, #tpu.memory_space<smem>>
    %73 = vector.broadcast %72 : f32 to vector<16x16xf32>
    %74 = arith.mulf %73, %71 : vector<16x16xf32>
    %75 = arith.addf %68, %74 : vector<16x16xf32>
    %c15_i32_30 = arith.constant 15 : i32
    %76 = tpu.dynamic_rotate %18 by %c15_i32_30 dim 0 : vector<16x16xf32>, i32 -> vector<16x16xf32>
    %cst_31 = arith.constant 0.000000e+00 : f32
    %77 = vector.broadcast %cst_31 : f32 to vector<16x16xf32>
    %78 = arith.select %24, %76, %77 : vector<16x16xi1>, vector<16x16xf32>
    %c7 = arith.constant 7 : index
    %79 = memref.load %arg2[%c7] : memref<18xf32, #tpu.memory_space<smem>>
    %80 = vector.broadcast %79 : f32 to vector<16x16xf32>
    %81 = arith.mulf %80, %78 : vector<16x16xf32>
    %82 = arith.addf %75, %81 : vector<16x16xf32>
    %c15_i32_32 = arith.constant 15 : i32
    %83 = tpu.dynamic_rotate %35 by %c15_i32_32 dim 0 : vector<16x16xf32>, i32 -> vector<16x16xf32>
    %cst_33 = arith.constant 0.000000e+00 : f32
    %84 = vector.broadcast %cst_33 : f32 to vector<16x16xf32>
    %85 = arith.select %24, %83, %84 : vector<16x16xi1>, vector<16x16xf32>
    %c8 = arith.constant 8 : index
    %86 = memref.load %arg2[%c8] : memref<18xf32, #tpu.memory_space<smem>>
    %87 = vector.broadcast %86 : f32 to vector<16x16xf32>
    %88 = arith.mulf %87, %85 : vector<16x16xf32>
    %89 = arith.addf %82, %88 : vector<16x16xf32>
    %c1_i32_34 = arith.constant 1 : i32
    %90 = tpu.dynamic_rotate %16 by %c1_i32_34 dim 1 : vector<16x16xf32>, i32 -> vector<16x16xf32>
    %cst_35 = arith.constant 0.000000e+00 : f32
    %91 = vector.broadcast %cst_35 : f32 to vector<16x16xf32>
    %92 = arith.select %26, %90, %91 : vector<16x16xi1>, vector<16x16xf32>
    %c15_i32_36 = arith.constant 15 : i32
    %93 = tpu.dynamic_rotate %16 by %c15_i32_36 dim 1 : vector<16x16xf32>, i32 -> vector<16x16xf32>
    %cst_37 = arith.constant 0.000000e+00 : f32
    %94 = vector.broadcast %cst_37 : f32 to vector<16x16xf32>
    %95 = arith.select %28, %93, %94 : vector<16x16xi1>, vector<16x16xf32>
    %c1_i32_38 = arith.constant 1 : i32
    %96 = tpu.dynamic_rotate %92 by %c1_i32_38 dim 0 : vector<16x16xf32>, i32 -> vector<16x16xf32>
    %cst_39 = arith.constant 0.000000e+00 : f32
    %97 = vector.broadcast %cst_39 : f32 to vector<16x16xf32>
    %98 = arith.select %22, %96, %97 : vector<16x16xi1>, vector<16x16xf32>
    %c9 = arith.constant 9 : index
    %99 = memref.load %arg2[%c9] : memref<18xf32, #tpu.memory_space<smem>>
    %100 = vector.broadcast %99 : f32 to vector<16x16xf32>
    %101 = arith.mulf %100, %98 : vector<16x16xf32>
    %102 = arith.addf %89, %101 : vector<16x16xf32>
    %c1_i32_40 = arith.constant 1 : i32
    %103 = tpu.dynamic_rotate %16 by %c1_i32_40 dim 0 : vector<16x16xf32>, i32 -> vector<16x16xf32>
    %cst_41 = arith.constant 0.000000e+00 : f32
    %104 = vector.broadcast %cst_41 : f32 to vector<16x16xf32>
    %105 = arith.select %22, %103, %104 : vector<16x16xi1>, vector<16x16xf32>
    %c10 = arith.constant 10 : index
    %106 = memref.load %arg2[%c10] : memref<18xf32, #tpu.memory_space<smem>>
    %107 = vector.broadcast %106 : f32 to vector<16x16xf32>
    %108 = arith.mulf %107, %105 : vector<16x16xf32>
    %109 = arith.addf %102, %108 : vector<16x16xf32>
    %c1_i32_42 = arith.constant 1 : i32
    %110 = tpu.dynamic_rotate %95 by %c1_i32_42 dim 0 : vector<16x16xf32>, i32 -> vector<16x16xf32>
    %cst_43 = arith.constant 0.000000e+00 : f32
    %111 = vector.broadcast %cst_43 : f32 to vector<16x16xf32>
    %112 = arith.select %22, %110, %111 : vector<16x16xi1>, vector<16x16xf32>
    %c11 = arith.constant 11 : index
    %113 = memref.load %arg2[%c11] : memref<18xf32, #tpu.memory_space<smem>>
    %114 = vector.broadcast %113 : f32 to vector<16x16xf32>
    %115 = arith.mulf %114, %112 : vector<16x16xf32>
    %116 = arith.addf %109, %115 : vector<16x16xf32>
    %c12 = arith.constant 12 : index
    %117 = memref.load %arg2[%c12] : memref<18xf32, #tpu.memory_space<smem>>
    %118 = vector.broadcast %117 : f32 to vector<16x16xf32>
    %119 = arith.mulf %118, %92 : vector<16x16xf32>
    %120 = arith.addf %116, %119 : vector<16x16xf32>
    %c13 = arith.constant 13 : index
    %121 = memref.load %arg2[%c13] : memref<18xf32, #tpu.memory_space<smem>>
    %122 = vector.broadcast %121 : f32 to vector<16x16xf32>
    %123 = arith.mulf %122, %16 : vector<16x16xf32>
    %124 = arith.addf %120, %123 : vector<16x16xf32>
    %c14 = arith.constant 14 : index
    %125 = memref.load %arg2[%c14] : memref<18xf32, #tpu.memory_space<smem>>
    %126 = vector.broadcast %125 : f32 to vector<16x16xf32>
    %127 = arith.mulf %126, %95 : vector<16x16xf32>
    %128 = arith.addf %124, %127 : vector<16x16xf32>
    %c15_i32_44 = arith.constant 15 : i32
    %129 = tpu.dynamic_rotate %92 by %c15_i32_44 dim 0 : vector<16x16xf32>, i32 -> vector<16x16xf32>
    %cst_45 = arith.constant 0.000000e+00 : f32
    %130 = vector.broadcast %cst_45 : f32 to vector<16x16xf32>
    %131 = arith.select %24, %129, %130 : vector<16x16xi1>, vector<16x16xf32>
    %c15 = arith.constant 15 : index
    %132 = memref.load %arg2[%c15] : memref<18xf32, #tpu.memory_space<smem>>
    %133 = vector.broadcast %132 : f32 to vector<16x16xf32>
    %134 = arith.mulf %133, %131 : vector<16x16xf32>
    %135 = arith.addf %128, %134 : vector<16x16xf32>
    %c15_i32_46 = arith.constant 15 : i32
    %136 = tpu.dynamic_rotate %16 by %c15_i32_46 dim 0 : vector<16x16xf32>, i32 -> vector<16x16xf32>
    %cst_47 = arith.constant 0.000000e+00 : f32
    %137 = vector.broadcast %cst_47 : f32 to vector<16x16xf32>
    %138 = arith.select %24, %136, %137 : vector<16x16xi1>, vector<16x16xf32>
    %c16 = arith.constant 16 : index
    %139 = memref.load %arg2[%c16] : memref<18xf32, #tpu.memory_space<smem>>
    %140 = vector.broadcast %139 : f32 to vector<16x16xf32>
    %141 = arith.mulf %140, %138 : vector<16x16xf32>
    %142 = arith.addf %135, %141 : vector<16x16xf32>
    %c15_i32_48 = arith.constant 15 : i32
    %143 = tpu.dynamic_rotate %95 by %c15_i32_48 dim 0 : vector<16x16xf32>, i32 -> vector<16x16xf32>
    %cst_49 = arith.constant 0.000000e+00 : f32
    %144 = vector.broadcast %cst_49 : f32 to vector<16x16xf32>
    %145 = arith.select %24, %143, %144 : vector<16x16xi1>, vector<16x16xf32>
    %c17 = arith.constant 17 : index
    %146 = memref.load %arg2[%c17] : memref<18xf32, #tpu.memory_space<smem>>
    %147 = vector.broadcast %146 : f32 to vector<16x16xf32>
    %148 = arith.mulf %147, %145 : vector<16x16xf32>
    %149 = arith.addf %142, %148 : vector<16x16xf32>
    %150 = arith.negf %149 : vector<16x16xf32>
    %151 = math.exp %150 : vector<16x16xf32>
    %cst_50 = arith.constant 1.000000e+00 : f32
    %152 = vector.broadcast %cst_50 : f32 to vector<16x16xf32>
    %153 = arith.addf %152, %151 : vector<16x16xf32>
    %154 = arith.divf %152, %153 : vector<16x16xf32>
    %c0_51 = arith.constant 0 : index
    %c0_52 = arith.constant 0 : index
    %c0_53 = arith.constant 0 : index
    %c0_54 = arith.constant 0 : index
    %155 = vector.load %arg3[%c0_51, %c0_52, %c0_53, %c0_54] : memref<1x1x16x16xf32, #tpu.memory_space<vmem>>, vector<1x1x16x16xf32>
    %156 = vector.shape_cast %155 : vector<1x1x16x16xf32> to vector<16x16xf32>
    %157 = vector.shape_cast %154 : vector<16x16xf32> to vector<1x1x16x16xf32>
    tpu.vector_store %arg3[%c0_51, %c0_52, %c0_53, %c0_54], %157 {strides = array<i32>} : memref<1x1x16x16xf32, #tpu.memory_space<vmem>>, vector<1x1x16x16xf32>,
    return
  }
  func.func @transform_0(%arg0: i32) -> (i32, i32, i32, i32) {
    %c0_i32 = arith.constant 0 : i32
    %c0_i32_0 = arith.constant 0 : i32
    %c0_i32_1 = arith.constant 0 : i32
    %c0_i32_2 = arith.constant 0 : i32
    return %arg0, %c0_i32, %c0_i32_0, %c0_i32_1 : i32, i32, i32, i32
  }
  func.func @transform_1(%arg0: i32) -> i32 {
    %c0_i32 = arith.constant 0 : i32
    %c0_i32_0 = arith.constant 0 : i32
    return %c0_i32 : i32
  }
  func.func @transform_2(%arg0: i32) -> (i32, i32, i32, i32) {
    %c0_i32 = arith.constant 0 : i32
    %c0_i32_0 = arith.constant 0 : i32
    %c0_i32_1 = arith.constant 0 : i32
    %c0_i32_2 = arith.constant 0 : i32
    return %arg0, %c0_i32, %c0_i32_0, %c0_i32_1 : i32, i32, i32, i32
  }
}

</mosaic_0001>

<llo_original>
// kernel: tpu_custom_call.1
$region0: #{tpu_custom_call.1}
  #allocation0 [shape = 'u32[]', space=smem, size = 0x4, offset = 0x4, fixed_abs, tag = 'smem constant byte address 0x4 - core index']
  #allocation1 [shape = 'u32[144,128]{1,0:T(1,128)}', space=vmem, size = 0x12000, scoped, tag = 'internal scratch']
  %s0 = inlined_call_operand.hbm [shape: f32[2,4,16,16], index: 0, kind: input, shape index: {}]
  %s1 = inlined_call_operand.vmem [shape: f32[18], index: 1, kind: input, shape index: {}]
  %s2 = inlined_call_operand.hbm [shape: f32[2,1,16,16], index: 2, kind: output, shape index: {}]
  %s3 = sld [smem:[#allocation0]]
  $region49: #{tpu_custom_call.1} parent=0
    _
  %s5 = ssub.s32 1, %s3
  %s6 = scalar_select 0, %s5, %s3
  $region1: #{tpu_custom_call.1} parent=0
    #allocation2 [shape = 'u8[65536]{0}', space=vmem, size = 0x10000, scoped, tag = 'input window, operand 0']
    #allocation3 [shape = 's32[2]{0}', space=sflag, size = 0x8, scoped, tag = 'scoped memory for tpu_custom_call.1']
    #allocation4 [shape = 's32[2]{0}', space=sflag, size = 0x8, scoped, tag = 'scoped memory for tpu_custom_call.1']
    #allocation5 [shape = 's32[2]{0}', space=sflag, size = 0x8, scoped, tag = 'scoped memory for tpu_custom_call.1']
    #allocation6 [shape = 'u8[512]{0}', space=smem, size = 0x200, scoped, tag = 'input window, operand 1, single buffered']
    #allocation7 [shape = 'u8[16384]{0}', space=vmem, size = 0x4000, scoped, tag = 'output window, operand 0']
    %7 = vsyncpa [#allocation3], 0
    %s8 = scalar_lea.sflag [#allocation3], 1
    %9 = vsyncpa %s8, 0
    %10 = vsyncpa [#allocation5], 0
    %11 = vsyncpa [#allocation4], 0
    %s12 = scalar_lea.sflag [#allocation4], 1
    %13 = vsyncpa %s12, 0
    loop: start=0, step=1, limit=4
    $region2: #{tpu_custom_call.1} parent=1 // loop_pre_header
      _
    $region3: #{tpu_custom_call.1} parent=1 // loop_header
      %s15 = sphi 0, %s19
      %p16 = scmp.ge.s32.totalorder %s15, 4
      %s25 = sphi 0, %s27
      %s28 = sphi 0, %s25
      %s29 = sphi 0, %s28
      %s45 = sphi 0, %s29
      %s49 = sphi 0, %s49
      %s51 = sphi 0, %s49
      %s52 = sphi 0, %s51
      %s66 = sphi 0, %s52
      %s72 = sphi 0, %s74
      %s75 = sphi 0, %s72
      %s76 = sphi 0, %s75
      %s92 = sphi 0, %s76
    $region4: #{tpu_custom_call.1} parent=1 // loop_header_branch
      %18 = sbr.rel (%p16) target = $region8
    $region5: #{tpu_custom_call.1} parent=1 // loop_body
      %s20 = ssub.s32 %s15, 1
      %s21 = ssub.s32 %s15, 2
      %s22 = sadd.s32 %s15, 1
      %s23 = ssub.s32 %s15, %s22
      %p24 = scmp.eq.s32.totalorder %s23, 0
      %s26 = sadd.s32 %s25, 1
      %s27 = scalar_select %p24, %s25, %s26
      %p30 = pneg %p24
      %p31 = scmp.eq.s32.totalorder %s15, 1
      %p32 = por %p30, %p31
      %p33 = scmp.ne.s32.totalorder %s25, %s28
      %p34 = scmp.eq.s32.totalorder %s15, 0
      %p35 = por %p33, %p34
      %p36 = scmp.ne.s32.totalorder %s25, %s28
      %p37 = scmp.eq.s32.totalorder %s20, 1
      %p38 = por %p36, %p37
      %p39 = scmp.ne.s32.totalorder %s28, %s29
      %p40 = scmp.eq.s32.totalorder %s20, 0
      %p41 = por %p39, %p40
      %p42 = scmp.ne.s32.totalorder %s28, %s29
      %p43 = scmp.eq.s32.totalorder %s21, 1
      %p44 = por %p42, %p43
      %p46 = scmp.ne.s32.totalorder %s29, %s45
      %p47 = scmp.eq.s32.totalorder %s21, 0
      %p48 = por %p46, %p47
      %s50 = sadd.s32 %s49, 1
      %p53 = scmp.eq.s32.totalorder %s15, 1
      %p54 = scmp.ne.s32.totalorder %s49, %s51
      %p55 = scmp.eq.s32.totalorder %s15, 0
      %p56 = por %p54, %p55
      %p57 = scmp.ne.s32.totalorder %s49, %s51
      %p58 = scmp.eq.s32.totalorder %s20, 1
      %p59 = por %p57, %p58
      %p60 = scmp.ne.s32.totalorder %s51, %s52
      %p61 = scmp.eq.s32.totalorder %s20, 0
      %p62 = por %p60, %p61
      %p63 = scmp.ne.s32.totalorder %s51, %s52
      %p64 = scmp.eq.s32.totalorder %s21, 1
      %p65 = por %p63, %p64
      %p67 = scmp.ne.s32.totalorder %s52, %s66
      %p68 = scmp.eq.s32.totalorder %s21, 0
      %p69 = por %p67, %p68
      %s70 = ssub.s32 %s15, %s22
      %p71 = scmp.eq.s32.totalorder %s70, 0
      %s73 = sadd.s32 %s72, 1
      %s74 = scalar_select %p71, %s72, %s73
      %p77 = pneg %p71
      %p78 = scmp.eq.s32.totalorder %s15, 1
      %p79 = por %p77, %p78
      %p80 = scmp.ne.s32.totalorder %s72, %s75
      %p81 = scmp.eq.s32.totalorder %s15, 0
      %p82 = por %p80, %p81
      %p83 = scmp.ne.s32.totalorder %s72, %s75
      %p84 = scmp.eq.s32.totalorder %s20, 1
      %p85 = por %p83, %p84
      %p86 = scmp.ne.s32.totalorder %s75, %s76
      %p87 = scmp.eq.s32.totalorder %s20, 0
      %p88 = por %p86, %p87
      %p89 = scmp.ne.s32.totalorder %s75, %s76
      %p90 = scmp.eq.s32.totalorder %s21, 1
      %p91 = por %p89, %p90
      %p93 = scmp.ne.s32.totalorder %s76, %s92
      %p94 = scmp.eq.s32.totalorder %s21, 0
      %p95 = por %p93, %p94
      %p96 = scmp.le.s32.totalorder 1, %s15
      %p97 = scmp.lt.s32.totalorder %s15, 3
      %p98 = pnand %p96, %p97
      %p99 = pneg %p98
      // Predicated region
      $region9: #{tpu_custom_call.1} parent=5 // pred_check
        _
      $region10: #{tpu_custom_call.1} parent=5 // pred_check_branch
        %101 = sbr.rel (%p98) target = $region12
      $region11: #{tpu_custom_call.1} parent=5 // pred_region
        %s102 = ssub.s32 %s15, 1
        // Predicated region
        $region13: #{tpu_custom_call.1} parent=11 // pred_check
          %p103 = pneg %p62
        $region14: #{tpu_custom_call.1} parent=11 // pred_check_branch
          %105 = sbr.rel (%p103) target = $region16
        $region15: #{tpu_custom_call.1} parent=11 // pred_region
          %s107 = ssub.s32 16, 16
          %108 = vsyncadd [#allocation5], %s107
          %s110 = sshll.u32 %s1, 4
          %s111 = int_to_ptr.vmem [resolvable:$true] %s110
          %113 = dma.vmem_to_smem %s111, 16, [#allocation6], [#allocation5]
        $region16: #{tpu_custom_call.1} parent=11 // pred_fallthru
          _
      $region12: #{tpu_custom_call.1} parent=5 // pred_fallthru
        _
      %p114 = scmp.lt.s32.totalorder %s15, 2
      // Predicated region
      $region17: #{tpu_custom_call.1} parent=5 // pred_check
        %p115 = pneg %p114
      $region18: #{tpu_custom_call.1} parent=5 // pred_check_branch
        %117 = sbr.rel (%p115) target = $region20
      $region19: #{tpu_custom_call.1} parent=5 // pred_region
        // Predicated region
        $region21: #{tpu_custom_call.1} parent=19 // pred_check
          %p118 = pneg %p35
        $region22: #{tpu_custom_call.1} parent=19 // pred_check_branch
          %120 = sbr.rel (%p118) target = $region24
        $region23: #{tpu_custom_call.1} parent=19 // pred_region
          %s121 = sand.u32 %s25, 1
          %s122 = scalar_lea.sflag [#allocation3], %s121
          %s123 = sand.u32 %s25, 1
          %s124 = smul.addr %s123, 64
          %s125 = scalar_lea.vmem [#allocation2], %s124
          %s127 = ssub.s32 1024, 1024
          %128 = vsyncadd %s122, %s127
          %s129 = smul.addr %s15, 8
          %s130 = smul.addr %s129, 128
          %s131 = scalar_lea.hbm %s0, %s130
          %s132 = sshll.u32 %s125, 4
          %s133 = int_to_ptr.vmem [resolvable:$true] %s132
          %138 = dma.hbm_to_vmem [thread:$0]  %s131, 1024, %s133, %s122, 128, 128, 8
        $region24: #{tpu_custom_call.1} parent=19 // pred_fallthru
          _
      $region20: #{tpu_custom_call.1} parent=5 // pred_fallthru
        _
      %p139 = scmp.le.s32.totalorder 1, %s15
      %p140 = scmp.lt.s32.totalorder %s15, 3
      %p141 = pnand %p139, %p140
      %p142 = pneg %p141
      // Predicated region
      $region25: #{tpu_custom_call.1} parent=5 // pred_check
        _
      $region26: #{tpu_custom_call.1} parent=5 // pred_check_branch
        %144 = sbr.rel (%p141) target = $region28
      $region27: #{tpu_custom_call.1} parent=5 // pred_region
        %s145 = ssub.s32 %s15, 1
        %s146 = sand.u32 %s28, 1
        %s147 = scalar_lea.sflag [#allocation3], %s146
        %s148 = sand.u32 %s28, 1
        %s149 = smul.addr %s148, 64
        %s150 = scalar_lea.vmem [#allocation2], %s149
        // Predicated region
        $region29: #{tpu_custom_call.1} parent=27 // pred_check
          %p151 = pneg %p41
        $region30: #{tpu_custom_call.1} parent=27 // pred_check_branch
          %153 = sbr.rel (%p151) target = $region32
        $region31: #{tpu_custom_call.1} parent=27 // pred_region
          %154 = dma.done %s147, 1024
        $region32: #{tpu_custom_call.1} parent=27 // pred_fallthru
          _
        // Predicated region
        $region33: #{tpu_custom_call.1} parent=27 // pred_check
          %p155 = pneg %p62
        $region34: #{tpu_custom_call.1} parent=27 // pred_check_branch
          %157 = sbr.rel (%p155) target = $region36
        $region35: #{tpu_custom_call.1} parent=27 // pred_region
          %158 = dma.done [#allocation5], 16
        $region36: #{tpu_custom_call.1} parent=27 // pred_fallthru
          _
        %159 = sfence
        %s160 = sand.u32 %s28, 1
        %s161 = scalar_lea.sflag [#allocation3], %s160
        %s162 = sand.u32 %s28, 1
        %s163 = smul.addr %s162, 64
        %s164 = scalar_lea.vmem [#allocation2], %s163
        %p165 = pneg %p41
        %p166 = pneg %p38
        %p167 = pneg %p62
        %p168 = pneg %p59
        %p169 = pneg %p88
        %p170 = pneg %p85
        %s171 = sand.u32 %s75, 1
        %s172 = scalar_lea.sflag [#allocation4], %s171
        %s173 = sand.u32 %s75, 1
        %s174 = smul.addr %s173, 16
        %s175 = scalar_lea.vmem [#allocation7], %s174
        %v176 = vld [vmem:[%s150] sm:$0xff]
        %v177 = vld [vmem:[%s150 + $0x8] sm:$0xff]
        %s178 = scalar_lea.vmem %s150, 16 [#allocation2]
        %v179 = vld [vmem:[%s178] sm:$0xff]
        %v180 = vld [vmem:[%s178 + $0x8] sm:$0xff]
        %v181 = vadd.f32 %v176, %v179
        %v182 = vadd.f32 %v177, %v180
        %v183 = vmax.f32 %v176, %v179
        %v184 = vmax.f32 %v177, %v180
        %s185 = scalar_lea.vmem %s150, 32 [#allocation2]
        %v186 = vld [vmem:[%s185] sm:$0xff]
        %v187 = vld [vmem:[%s185 + $0x8] sm:$0xff]
        %v188 = vadd.f32 %v181, %v186
        %v189 = vadd.f32 %v182, %v187
        %v190 = vmax.f32 %v183, %v186
        %v191 = vmax.f32 %v184, %v187
        %s192 = scalar_lea.vmem %s150, 48 [#allocation2]
        %v193 = vld [vmem:[%s192] sm:$0xff]
        %v194 = vld [vmem:[%s192 + $0x8] sm:$0xff]
        %v195 = vadd.f32 %v188, %v193
        %v196 = vadd.f32 %v189, %v194
        %v197 = vmax.f32 %v190, %v193
        %v198 = vmax.f32 %v191, %v194
        %v199 = vmul.f32 %v195, 0.25
        %v200 = vmul.f32 %v196, 0.25
        %v201 = vlaneseq
        %v202 = vshrl.u32 %v201, 7
        %v203 = vadd.s32 %v202, 8
        %v204 = vlaneseq
        %v205 = vand.u32 %v204, 127
        %vm206 = vcmp.ge.s32.totalorder %v202, 1
        %vm207 = vcmp.ge.s32.totalorder %v203, 1
        %vm208 = vcmp.lt.s32.totalorder %v202, 15
        %vm209 = vcmp.lt.s32.totalorder %v203, 15
        %vm210 = vcmp.ge.s32.totalorder %v205, 1
        %vm211 = vcmp.lt.s32.totalorder %v205, 15
        %vm212 = vcmask 1047680
        %213 = vrot.lane.b32.xlu0 %v199, 16
        %v214 = vpop.permute.xlu0 %213
        %v215 = vsel %vm212, %v214, %v199
        %216 = vrot.lane.b32.xlu0 %v200, 16
        %v217 = vpop.permute.xlu0 %216
        %v218 = vsel %vm212, %v217, %v200
        %219 = vrot.lane.b32.xlu0 %v215, 16
        %v220 = vpop.permute.xlu0 %219
        %221 = vrot.lane.b32.xlu0 %v218, 16
        %v222 = vpop.permute.xlu0 %221
        %v223 = vsel %vm212, %v220, %v199
        %v224 = vsel %vm212, %v222, %v200
        %227 = vrot.lane.b32.xlu0 %v223, 113
        %v228 = vpop.permute.xlu0 %227
        %229 = vrot.lane.b32.xlu0 %v224, 113
        %v230 = vpop.permute.xlu0 %229
        %v233 = vsel %vm210, %v228, 0.0
        %v234 = vsel %vm210, %v230, 0.0
        %235 = vrot.lane.b32.xlu0 %v223, 127
        %v236 = vpop.permute.xlu0 %235
        %237 = vrot.lane.b32.xlu0 %v224, 127
        %v238 = vpop.permute.xlu0 %237
        %v241 = vsel %vm211, %v236, 0.0
        %v242 = vsel %vm211, %v238, 0.0
        %v243 = vrot.slane %v233, 7
        %v244 = vrot.slane %v234, 7
        %vm245 = vcmp.lt.s32.totalorder %v202, 1
        %v246 = vsel %vm245, %v243, %v244
        %v247 = vsel %vm245, %v244, %v243
        %v248 = vsel %vm206, %v247, 0.0
        %v249 = vsel %vm207, %v246, 0.0
        %s250 = sld [smem:[#allocation6]]
        %v251 = vstv %s250
        %v252 = vmul.f32 %v251, %v248
        %v253 = vmul.f32 %v251, %v249
        %v254 = vadd.f32 %v252, 0.0
        %v255 = vadd.f32 %v253, 0.0
        %v256 = vrot.slane %v199, 7
        %v257 = vrot.slane %v200, 7
        %v258 = vsel %vm245, %v256, %v257
        %v259 = vsel %vm245, %v257, %v256
        %v260 = vsel %vm206, %v259, 0.0
        %v261 = vsel %vm207, %v258, 0.0
        %s262 = sld [smem:[#allocation6 + $0x1]]
        %v263 = vstv %s262
        %v264 = vmul.f32 %v263, %v260
        %v265 = vmul.f32 %v263, %v261
        %v266 = vadd.f32 %v254, %v264
        %v267 = vadd.f32 %v255, %v265
        %v268 = vrot.slane %v241, 7
        %v269 = vrot.slane %v242, 7
        %v270 = vsel %vm245, %v268, %v269
        %v271 = vsel %vm245, %v269, %v268
        %v272 = vsel %vm206, %v271, 0.0
        %v273 = vsel %vm207, %v270, 0.0
        %s274 = sld [smem:[#allocation6 + $0x2]]
        %v275 = vstv %s274
        %v276 = vmul.f32 %v275, %v272
        %v277 = vmul.f32 %v275, %v273
        %v278 = vadd.f32 %v266, %v276
        %v279 = vadd.f32 %v267, %v277
        %s280 = sld [smem:[#allocation6 + $0x3]]
        %v281 = vstv %s280
        %v282 = vmul.f32 %v281, %v233
        %v283 = vmul.f32 %v281, %v234
        %v284 = vadd.f32 %v278, %v282
        %v285 = vadd.f32 %v279, %v283
        %s286 = sld [smem:[#allocation6 + $0x4]]
        %v287 = vstv %s286
        %v288 = vmul.f32 %v287, %v199
        %v289 = vmul.f32 %v287, %v200
        %v290 = vadd.f32 %v284, %v288
        %v291 = vadd.f32 %v285, %v289
        %s292 = sld [smem:[#allocation6 + $0x5]]
        %v293 = vstv %s292
        %v294 = vmul.f32 %v293, %v241
        %v295 = vmul.f32 %v293, %v242
        %v296 = vadd.f32 %v290, %v294
        %v297 = vadd.f32 %v291, %v295
        %v298 = vrot.slane %v233, 1
        %v299 = vrot.slane %v234, 1
        %vm300 = vcmp.lt.s32.totalorder %v202, 7
        %v301 = vsel %vm300, %v298, %v299
        %v302 = vsel %vm300, %v299, %v298
        %v303 = vsel %vm208, %v301, 0.0
        %v304 = vsel %vm209, %v302, 0.0
        %s305 = sld [smem:[#allocation6 + $0x6]]
        %v306 = vstv %s305
        %v307 = vmul.f32 %v306, %v303
        %v308 = vmul.f32 %v306, %v304
        %v309 = vadd.f32 %v296, %v307
        %v310 = vadd.f32 %v297, %v308
        %v311 = vrot.slane %v199, 1
        %v312 = vrot.slane %v200, 1
        %v313 = vsel %vm300, %v311, %v312
        %v314 = vsel %vm300, %v312, %v311
        %v315 = vsel %vm208, %v313, 0.0
        %v316 = vsel %vm209, %v314, 0.0
        %s317 = sld [smem:[#allocation6 + $0x7]]
        %v318 = vstv %s317
        %v319 = vmul.f32 %v318, %v315
        %v320 = vmul.f32 %v318, %v316
        %v321 = vadd.f32 %v309, %v319
        %v322 = vadd.f32 %v310, %v320
        %v323 = vrot.slane %v241, 1
        %v324 = vrot.slane %v242, 1
        %v325 = vsel %vm300, %v323, %v324
        %v326 = vsel %vm300, %v324, %v323
        %v327 = vsel %vm208, %v325, 0.0
        %v328 = vsel %vm209, %v326, 0.0
        %s329 = sld [smem:[#allocation6 + $0x8]]
        %v330 = vstv %s329
        %v331 = vmul.f32 %v330, %v327
        %v332 = vmul.f32 %v330, %v328
        %v333 = vadd.f32 %v321, %v331
        %v334 = vadd.f32 %v322, %v332
        %335 = vrot.lane.b32.xlu0 %v197, 16
        %v336 = vpop.permute.xlu0 %335
        %v337 = vsel %vm212, %v336, %v197
        %338 = vrot.lane.b32.xlu0 %v198, 16
        %v339 = vpop.permute.xlu0 %338
        %v340 = vsel %vm212, %v339, %v198
        %341 = vrot.lane.b32.xlu0 %v337, 16
        %v342 = vpop.permute.xlu0 %341
        %343 = vrot.lane.b32.xlu0 %v340, 16
        %v344 = vpop.permute.xlu0 %343
        %v345 = vsel %vm212, %v342, %v197
        %v346 = vsel %vm212, %v344, %v198
        %349 = vrot.lane.b32.xlu0 %v345, 113
        %v350 = vpop.permute.xlu0 %349
        %351 = vrot.lane.b32.xlu0 %v346, 113
        %v352 = vpop.permute.xlu0 %351
        %v355 = vsel %vm210, %v350, 0.0
        %v356 = vsel %vm210, %v352, 0.0
        %357 = vrot.lane.b32.xlu0 %v345, 127
        %v358 = vpop.permute.xlu0 %357
        %359 = vrot.lane.b32.xlu0 %v346, 127
        %v360 = vpop.permute.xlu0 %359
        %v363 = vsel %vm211, %v358, 0.0
        %v364 = vsel %vm211, %v360, 0.0
        %v365 = vrot.slane %v355, 7
        %v366 = vrot.slane %v356, 7
        %v367 = vsel %vm245, %v365, %v366
        %v368 = vsel %vm245, %v366, %v365
        %v369 = vsel %vm206, %v368, 0.0
        %v370 = vsel %vm207, %v367, 0.0
        %s371 = sld [smem:[#allocation6 + $0x9]]
        %v372 = vstv %s371
        %v373 = vmul.f32 %v372, %v369
        %v374 = vmul.f32 %v372, %v370
        %v375 = vadd.f32 %v333, %v373
        %v376 = vadd.f32 %v334, %v374
        %v377 = vrot.slane %v197, 7
        %v378 = vrot.slane %v198, 7
        %v379 = vsel %vm245, %v377, %v378
        %v380 = vsel %vm245, %v378, %v377
        %v381 = vsel %vm206, %v380, 0.0
        %v382 = vsel %vm207, %v379, 0.0
        %s383 = sld [smem:[#allocation6 + $0xa]]
        %v384 = vstv %s383
        %v385 = vmul.f32 %v384, %v381
        %v386 = vmul.f32 %v384, %v382
        %v387 = vadd.f32 %v375, %v385
        %v388 = vadd.f32 %v376, %v386
        %v389 = vrot.slane %v363, 7
        %v390 = vrot.slane %v364, 7
        %v391 = vsel %vm245, %v389, %v390
        %v392 = vsel %vm245, %v390, %v389
        %v393 = vsel %vm206, %v392, 0.0
        %v394 = vsel %vm207, %v391, 0.0
        %s395 = sld [smem:[#allocation6 + $0xb]]
        %v396 = vstv %s395
        %v397 = vmul.f32 %v396, %v393
        %v398 = vmul.f32 %v396, %v394
        %v399 = vadd.f32 %v387, %v397
        %v400 = vadd.f32 %v388, %v398
        %s401 = sld [smem:[#allocation6 + $0xc]]
        %v402 = vstv %s401
        %v403 = vmul.f32 %v402, %v355
        %v404 = vmul.f32 %v402, %v356
        %v405 = vadd.f32 %v399, %v403
        %v406 = vadd.f32 %v400, %v404
        %s407 = sld [smem:[#allocation6 + $0xd]]
        %v408 = vstv %s407
        %v409 = vmul.f32 %v408, %v197
        %v410 = vmul.f32 %v408, %v198
        %v411 = vadd.f32 %v405, %v409
        %v412 = vadd.f32 %v406, %v410
        %s413 = sld [smem:[#allocation6 + $0xe]]
        %v414 = vstv %s413
        %v415 = vmul.f32 %v414, %v363
        %v416 = vmul.f32 %v414, %v364
        %v417 = vadd.f32 %v411, %v415
        %v418 = vadd.f32 %v412, %v416
        %v419 = vrot.slane %v355, 1
        %v420 = vrot.slane %v356, 1
        %v421 = vsel %vm300, %v419, %v420
        %v422 = vsel %vm300, %v420, %v419
        %v423 = vsel %vm208, %v421, 0.0
        %v424 = vsel %vm209, %v422, 0.0
        %s425 = sld [smem:[#allocation6 + $0xf]]
        %v426 = vstv %s425
        %v427 = vmul.f32 %v426, %v423
        %v428 = vmul.f32 %v426, %v424
        %v429 = vadd.f32 %v417, %v427
        %v430 = vadd.f32 %v418, %v428
        %v431 = vrot.slane %v197, 1
        %v432 = vrot.slane %v198, 1
        %v433 = vsel %vm300, %v431, %v432
        %v434 = vsel %vm300, %v432, %v431
        %v435 = vsel %vm208, %v433, 0.0
        %v436 = vsel %vm209, %v434, 0.0
        %s437 = sld [smem:[#allocation6 + $0x10]]
        %v438 = vstv %s437
        %v439 = vmul.f32 %v438, %v435
        %v440 = vmul.f32 %v438, %v436
        %v441 = vadd.f32 %v429, %v439
        %v442 = vadd.f32 %v430, %v440
        %v443 = vrot.slane %v363, 1
        %v444 = vrot.slane %v364, 1
        %v445 = vsel %vm300, %v443, %v444
        %v446 = vsel %vm300, %v444, %v443
        %v447 = vsel %vm208, %v445, 0.0
        %v448 = vsel %vm209, %v446, 0.0
        %s449 = sld [smem:[#allocation6 + $0x11]]
        %v450 = vstv %s449
        %v451 = vmul.f32 %v450, %v447
        %v452 = vmul.f32 %v450, %v448
        %v453 = vadd.f32 %v441, %v451
        %v454 = vadd.f32 %v442, %v452
        %v455 = vxor.u32 %v453, 2147483648
        %v456 = vxor.u32 %v454, 2147483648
        %v457 = vmul.f32 %v455, 1.442695
        %v458 = vpow.pop %v457
        %v459 = vmul.f32 %v456, 1.442695
        %v460 = vpow.pop %v459
        %v461 = vadd.f32 %v458, 1.0
        %v462 = vadd.f32 %v460, 1.0
        %v463 = vrcp.pop %v461
        %v464 = vmul.f32 1.0, %v463
        %v465 = vrcp.pop %v462
        %v466 = vmul.f32 1.0, %v465
        %vm467 = vcmask 130048
        %468 = vst.msk [vmem:[%s175] sm:$0xff] %vm467, %v464
        %469 = vst.msk [vmem:[%s175 + $0x8] sm:$0xff] %vm467, %v466
        %s470 = sand.u32 %s75, 1
        %s471 = scalar_lea.sflag [#allocation4], %s470
        %s472 = sand.u32 %s75, 1
        %s473 = smul.addr %s472, 16
        %s474 = scalar_lea.vmem [#allocation7], %s473
        // Predicated region
        $region37: #{tpu_custom_call.1} parent=27 // pred_check
          %p475 = pneg %p85
        $region38: #{tpu_custom_call.1} parent=27 // pred_check_branch
          %477 = sbr.rel (%p475) target = $region40
        $region39: #{tpu_custom_call.1} parent=27 // pred_region
          %s479 = ssub.s32 256, 256
          %480 = vsyncadd %s471, %s479
          %s481 = smul.addr %s20, 2
          %s482 = smul.addr %s481, 128
          %s483 = scalar_lea.hbm %s2, %s482
          %s484 = sshll.u32 %s474, 4
          %s485 = int_to_ptr.vmem [resolvable:$true] %s484
          %490 = dma.vmem_to_hbm [thread:$0]  %s485, 256, %s483, %s471, 128, 128, 8
        $region40: #{tpu_custom_call.1} parent=27 // pred_fallthru
          _
      $region28: #{tpu_custom_call.1} parent=5 // pred_fallthru
        _
      %p491 = scmp.le.s32.totalorder 2, %s15
      // Predicated region
      $region41: #{tpu_custom_call.1} parent=5 // pred_check
        %p492 = pneg %p491
      $region42: #{tpu_custom_call.1} parent=5 // pred_check_branch
        %494 = sbr.rel (%p492) target = $region44
      $region43: #{tpu_custom_call.1} parent=5 // pred_region
        %s495 = ssub.s32 %s15, 2
        // Predicated region
        $region45: #{tpu_custom_call.1} parent=43 // pred_check
          %p496 = pneg %p91
        $region46: #{tpu_custom_call.1} parent=43 // pred_check_branch
          %498 = sbr.rel (%p496) target = $region48
        $region47: #{tpu_custom_call.1} parent=43 // pred_region
          %s499 = sand.u32 %s76, 1
          %s500 = scalar_lea.sflag [#allocation4], %s499
          %s501 = sand.u32 %s76, 1
          %s502 = smul.addr %s501, 16
          %s503 = scalar_lea.vmem [#allocation7], %s502
          %504 = dma.done %s500, 256
        $region48: #{tpu_custom_call.1} parent=43 // pred_fallthru
          _
      $region44: #{tpu_custom_call.1} parent=5 // pred_fallthru
        _
    $region6: #{tpu_custom_call.1} parent=1 // loop_footer
      %s19 = sadd.s32 1, %s15
    $region7: #{tpu_custom_call.1} parent=1 // loop_footer_branch
      %14 = sbr.rel target = $region3
    $region8: #{tpu_custom_call.1} parent=1 // loop_exit
      _
    %505 = vsyncpa [#allocation3], 1
    %s506 = scalar_lea.sflag [#allocation3], 1
    %507 = vsyncpa %s506, 1
    %508 = vsyncpa [#allocation4], 1
    %s509 = scalar_lea.sflag [#allocation4], 1
    %510 = vsyncpa %s509, 1
    %511 = vsyncpa [#allocation5], 1
    %s512 = scalar_lea.sflag [#allocation5], 1
    %513 = vsyncpa %s512, 1

</llo_original>
